<compile_context>
chip_gen: v7x
topology: tpu7x:2x2x1
jax: 0.10.0
libtpu: 0.0.40
codegen_flags: <defaults>
</compile_context>

<pallas_src>
import math

import jax
import jax.numpy as jnp
from jax.experimental import pallas as pl
from jax.experimental.pallas import tpu as pltpu


_LANE = 1024            # lane-dense last dim (multiple of 128 -> unmasked vst)
_MAX_BLOCK_ROWS = 1024  # 1024 x 1024 f32 = 4 MiB per VMEM buffer

# Abramowitz & Stegun 7.1.26 erf coefficients, constant-folded for gelu:
#   erf(t2/sqrt(2)):  t = 1/(1 + P*t2) with P = p/sqrt(2)
#   gelu(t2) = 0.5*t2*(1 + erf) = t2*(1 - poly_half(t)*exp(-0.5*t2*t2))
# where poly_half has each a_i pre-scaled by 0.5.
_P  = 0.3275911 / math.sqrt(2.0)
_A1 = 0.5 * 0.254829592
_A2 = 0.5 * -0.284496736
_A3 = 0.5 * 1.421413741
_A4 = 0.5 * -1.453152027
_A5 = 0.5 * 1.061405429


def _round_up(n, m):
    return ((n + m - 1) // m) * m


def _cdiv(a, b):
    return -(-a // b)


def _eltwise_kernel(x_ref, o_ref):
    x = x_ref[...]
    t2 = jnp.maximum(x, 0.0)                 # relu  (t2 >= 0 afterwards)
    h = 0.5 * t2

    # silu(t2) = t2 * sigmoid(t2) = 0.5*t2*(1 + tanh(0.5*t2))   (exact identity)
    t3 = h * (1.0 + jnp.tanh(h))

    # gelu(t2), exact/erf variant (torch default), constants folded:
    #   t4 = t2 * (1 - poly_half(1/(1 + P*t2)) * exp(-0.5*t2*t2))
    t = 1.0 / (1.0 + _P * t2)                # full-precision divide (accuracy)
    poly = ((((_A5 * t + _A4) * t + _A3) * t + _A2) * t + _A1) * t
    t4 = t2 * (1.0 - poly * jnp.exp(-h * t2))

    t5 = jnp.tanh(t4)
    o_ref[...] = t2 + t3 + t5


def module_forward(x):
    """x: (B, C, H, W) float32 (NCHW, same as the PyTorch module input)."""
    orig_shape = x.shape
    total = x.size

    # Re-slab to a lane-dense (rows, _LANE) 2-D layout.  Pad with zeros only
    # when the flat size is not a multiple of the lane width (zeros are fixed
    # points of the whole op chain and are sliced off afterwards).
    rows = _cdiv(total, _LANE)
    needs_pad = (total % _LANE) != 0
    flat = x.reshape(-1)
    if needs_pad:
        flat = jnp.pad(flat, (0, rows * _LANE - total))
    x2d = flat.reshape(rows, _LANE)

    # Block-row choice:
    #   * tiny inputs: one block equal to the full array (no 8-row rounding
    #     needed, block == full dim satisfies the (8,128) rule),
    #   * otherwise: >= 2 blocks (rows a multiple of 8) so both v7x
    #     TensorCores get work, capped at _MAX_BLOCK_ROWS for VMEM.
    if rows <= 8:
        block_rows = rows
    else:
        block_rows = min(_MAX_BLOCK_ROWS, _round_up(_cdiv(rows, 2), 8))
    grid = (_cdiv(rows, block_rows),)

    out2d = pl.pallas_call(
        _eltwise_kernel,
        out_shape=jax.ShapeDtypeStruct(x2d.shape, x2d.dtype),
        grid=grid,
        in_specs=[pl.BlockSpec((block_rows, _LANE), lambda i: (i, 0))],
        out_specs=pl.BlockSpec((block_rows, _LANE), lambda i: (i, 0)),
        compiler_params=pltpu.CompilerParams(
            dimension_semantics=("parallel",),
            vmem_limit_bytes=32 * 1024 * 1024,
        ),
    )(x2d)

    out = out2d.reshape(-1)
    if needs_pad:
        out = out[:total]
    return out.reshape(orig_shape)


def _reference(x):
    t2 = jax.nn.relu(x)
    t3 = jax.nn.silu(t2)
    t4 = jax.nn.gelu(t2, approximate=False)
    t5 = jnp.tanh(t4)
    return t2 + t3 + t5


if __name__ == "__main__":
    key = jax.random.PRNGKey(0)
    x = jax.random.normal(key, (2, 4, 16, 16), dtype=jnp.float32)

    out = module_forward(x)
    jax.block_until_ready(out)

    ref = _reference(x)
    assert out.shape == ref.shape and out.dtype == ref.dtype
    err = float(jnp.max(jnp.abs(out - ref)))
    assert err < 2e-5, f"mismatch vs reference: max abs err = {err}"

    print("KERNEL_OK")
</pallas_src>

<mosaic_0001>
module attributes {stable_mosaic.version = 11 : i64} {
  func.func @_eltwise_kernel(%arg0: i32, %arg1: memref<2x1024xf32, #tpu.memory_space<vmem>>, %arg2: memref<2x1024xf32, #tpu.memory_space<vmem>>) attributes {dimension_semantics = [#tpu.dimension_semantics<parallel>], iteration_bounds = array<i64: 1>, scalar_prefetch = 0 : i64, scratch_operands = 0 : i64, tpu.core_type = #tpu.core_type<tc>, window_params = [{transform_indices = @transform_0, window_bounds = array<i64: 2, 1024>}, {transform_indices = @transform_1, window_bounds = array<i64: 2, 1024>}]} {
    %c0 = arith.constant 0 : index
    %c0_0 = arith.constant 0 : index
    %0 = vector.load %arg1[%c0, %c0_0] : memref<2x1024xf32, #tpu.memory_space<vmem>>, vector<2x1024xf32>
    %cst = arith.constant 0.000000e+00 : f32
    %1 = vector.broadcast %cst : f32 to vector<2x1024xf32>
    %2 = arith.maximumf %0, %1 : vector<2x1024xf32>
    %cst_1 = arith.constant 5.000000e-01 : f32
    %3 = vector.broadcast %cst_1 : f32 to vector<2x1024xf32>
    %4 = arith.mulf %3, %2 : vector<2x1024xf32>
    %5 = math.tanh %4 : vector<2x1024xf32>
    %cst_2 = arith.constant 1.000000e+00 : f32
    %6 = vector.broadcast %cst_2 : f32 to vector<2x1024xf32>
    %7 = arith.addf %6, %5 : vector<2x1024xf32>
    %8 = arith.mulf %4, %7 : vector<2x1024xf32>
    %cst_3 = arith.constant 0.231641889 : f32
    %9 = vector.broadcast %cst_3 : f32 to vector<2x1024xf32>
    %10 = arith.mulf %9, %2 : vector<2x1024xf32>
    %cst_4 = arith.constant 1.000000e+00 : f32
    %11 = vector.broadcast %cst_4 : f32 to vector<2x1024xf32>
    %12 = arith.addf %11, %10 : vector<2x1024xf32>
    %cst_5 = arith.constant 1.000000e+00 : f32
    %13 = vector.broadcast %cst_5 : f32 to vector<2x1024xf32>
    %14 = arith.divf %13, %12 : vector<2x1024xf32>
    %cst_6 = arith.constant 0.53070271 : f32
    %15 = vector.broadcast %cst_6 : f32 to vector<2x1024xf32>
    %16 = arith.mulf %15, %14 : vector<2x1024xf32>
    %cst_7 = arith.constant -0.72657603 : f32
    %17 = vector.broadcast %cst_7 : f32 to vector<2x1024xf32>
    %18 = arith.addf %16, %17 : vector<2x1024xf32>
    %19 = arith.mulf %18, %14 : vector<2x1024xf32>
    %cst_8 = arith.constant 0.710706889 : f32
    %20 = vector.broadcast %cst_8 : f32 to vector<2x1024xf32>
    %21 = arith.addf %19, %20 : vector<2x1024xf32>
    %22 = arith.mulf %21, %14 : vector<2x1024xf32>
    %cst_9 = arith.constant -0.142248362 : f32
    %23 = vector.broadcast %cst_9 : f32 to vector<2x1024xf32>
    %24 = arith.addf %22, %23 : vector<2x1024xf32>
    %25 = arith.mulf %24, %14 : vector<2x1024xf32>
    %cst_10 = arith.constant 0.127414793 : f32
    %26 = vector.broadcast %cst_10 : f32 to vector<2x1024xf32>
    %27 = arith.addf %25, %26 : vector<2x1024xf32>
    %28 = arith.mulf %27, %14 : vector<2x1024xf32>
    %cst_11 = arith.constant 0.000000e+00 : f32
    %29 = vector.broadcast %cst_11 : f32 to vector<2x1024xf32>
    %30 = arith.subf %29, %4 : vector<2x1024xf32>
    %31 = arith.mulf %30, %2 : vector<2x1024xf32>
    %32 = math.exp %31 : vector<2x1024xf32>
    %33 = arith.mulf %28, %32 : vector<2x1024xf32>
    %cst_12 = arith.constant 1.000000e+00 : f32
    %34 = vector.broadcast %cst_12 : f32 to vector<2x1024xf32>
    %35 = arith.subf %34, %33 : vector<2x1024xf32>
    %36 = arith.mulf %2, %35 : vector<2x1024xf32>
    %37 = math.tanh %36 : vector<2x1024xf32>
    %38 = arith.addf %2, %8 : vector<2x1024xf32>
    %39 = arith.addf %38, %37 : vector<2x1024xf32>
    %c0_13 = arith.constant 0 : index
    %c0_14 = arith.constant 0 : index
    %40 = vector.load %arg2[%c0_13, %c0_14] : memref<2x1024xf32, #tpu.memory_space<vmem>>, vector<2x1024xf32>
    tpu.vector_store %arg2[%c0_13, %c0_14], %39 {strides = array<i32>} : memref<2x1024xf32, #tpu.memory_space<vmem>>, vector<2x1024xf32>,
    return
  }
  func.func @transform_0(%arg0: i32) -> (i32, i32) {
    %c0_i32 = arith.constant 0 : i32
    %c0_i32_0 = arith.constant 0 : i32
    return %arg0, %c0_i32 : i32, i32
  }
  func.func @transform_1(%arg0: i32) -> (i32, i32) {
    %c0_i32 = arith.constant 0 : i32
    %c0_i32_0 = arith.constant 0 : i32
    return %arg0, %c0_i32 : i32, i32
  }
}

</mosaic_0001>

<llo_original>
// kernel: tpu_custom_call.1
$region0: #{tpu_custom_call.1}
  #allocation0 [shape = 'u32[]', space=smem, size = 0x4, offset = 0x4, fixed_abs, tag = 'smem constant byte address 0x4 - core index']
  #allocation1 [shape = 'u32[144,128]{1,0:T(1,128)}', space=vmem, size = 0x12000, scoped, tag = 'internal scratch']
  %s0 = inlined_call_operand.hbm [shape: f32[2,1024], index: 0, kind: input, shape index: {}]
  %s1 = inlined_call_operand.hbm [shape: f32[2,1024], index: 1, kind: output, shape index: {}]
  %s2 = sld [smem:[#allocation0]]
  $region18: #{tpu_custom_call.1} parent=0
    _
  %s4 = ssub.s32 1, %s2
  %s5 = scalar_select 0, %s4, %s2
  $region1: #{tpu_custom_call.1} parent=0
    #allocation2 [shape = 'u8[8192]{0}', space=vmem, size = 0x2000, scoped, tag = 'input window, operand 0, single buffered']
    #allocation3 [shape = 's32[1]{0}', space=sflag, size = 0x4, scoped, tag = 'scoped memory for tpu_custom_call.1']
    #allocation4 [shape = 's32[1]{0}', space=sflag, size = 0x4, scoped, tag = 'scoped memory for tpu_custom_call.1']
    #allocation5 [shape = 'u8[8192]{0}', space=vmem, size = 0x2000, scoped, tag = 'output window, operand 0, single buffered']
    %6 = vsyncpa [#allocation3], 0
    %7 = vsyncpa [#allocation4], 0
    // Predicated region
    $region2: #{tpu_custom_call.1} parent=1 // pred_check
      _
    $region3: #{tpu_custom_call.1} parent=1 // pred_check_branch
      %9 = sbr.rel (0) target = $region5
    $region4: #{tpu_custom_call.1} parent=1 // pred_region
      %s11 = ssub.s32 256, 256
      %12 = vsyncadd [#allocation3], %s11
      %s14 = sshll.u32 [#allocation2], 4
      %s15 = int_to_ptr.vmem [resolvable:$true] %s14
      %17 = dma.hbm_to_vmem [thread:$0]  %s0, 256, %s15, [#allocation3]
    $region5: #{tpu_custom_call.1} parent=1 // pred_fallthru
      _
    // Predicated region
    $region6: #{tpu_custom_call.1} parent=1 // pred_check
      _
    $region7: #{tpu_custom_call.1} parent=1 // pred_check_branch
      %19 = sbr.rel (0) target = $region9
    $region8: #{tpu_custom_call.1} parent=1 // pred_region
      %20 = dma.done [#allocation3], 256
    $region9: #{tpu_custom_call.1} parent=1 // pred_fallthru
      _
    %v21 = vld [vmem:[#allocation2] sm:$0xff]
    %v22 = vld [vmem:[#allocation2 + $0x8] sm:$0xff]
    %v23 = vmax.f32 %v21, 0.0
    %v24 = vmax.f32 %v22, 0.0
    %v25 = vmul.f32 %v23, 0.5
    %v26 = vmul.f32 %v24, 0.5
    %v27 = vtanh.pop %v25
    %v28 = vtanh.pop %v26
    %v29 = vadd.f32 %v27, 1.0
    %v30 = vadd.f32 %v28, 1.0
    %v31 = vmul.f32 %v25, %v29
    %v32 = vmul.f32 %v26, %v30
    %v33 = vmul.f32 %v23, 0.23164189
    %v34 = vmul.f32 %v24, 0.23164189
    %v35 = vadd.f32 %v33, 1.0
    %v36 = vadd.f32 %v34, 1.0
    %v37 = vrcp.pop %v35
    %v38 = vmul.f32 1.0, %v37
    %v39 = vrcp.pop %v36
    %v40 = vmul.f32 1.0, %v39
    %v41 = vmul.f32 %v38, 0.5307027
    %v42 = vmul.f32 %v40, 0.5307027
    %v43 = vadd.f32 %v41, -0.72657603
    %v44 = vadd.f32 %v42, -0.72657603
    %v45 = vmul.f32 %v43, %v38
    %v46 = vmul.f32 %v44, %v40
    %v47 = vadd.f32 %v45, 0.7107069
    %v48 = vadd.f32 %v46, 0.7107069
    %v49 = vmul.f32 %v47, %v38
    %v50 = vmul.f32 %v48, %v40
    %v51 = vadd.f32 %v49, -0.14224836
    %v52 = vadd.f32 %v50, -0.14224836
    %v53 = vmul.f32 %v51, %v38
    %v54 = vmul.f32 %v52, %v40
    %v55 = vadd.f32 %v53, 0.1274148
    %v56 = vadd.f32 %v54, 0.1274148
    %v57 = vmul.f32 %v55, %v38
    %v58 = vmul.f32 %v56, %v40
    %v59 = vsub.f32 0.0, %v25
    %v60 = vsub.f32 0.0, %v26
    %v61 = vmul.f32 %v59, %v23
    %v62 = vmul.f32 %v60, %v24
    %v63 = vmul.f32 %v61, 1.442695
    %v64 = vpow.pop %v63
    %v65 = vmul.f32 %v62, 1.442695
    %v66 = vpow.pop %v65
    %v67 = vmul.f32 %v57, %v64
    %v68 = vmul.f32 %v58, %v66
    %v69 = vsub.f32 1.0, %v67
    %v70 = vsub.f32 1.0, %v68
    %v71 = vmul.f32 %v23, %v69
    %v72 = vmul.f32 %v24, %v70
    %v73 = vtanh.pop %v71
    %v74 = vtanh.pop %v72
    %v75 = vadd.f32 %v23, %v31
    %v76 = vadd.f32 %v24, %v32
    %v77 = vadd.f32 %v75, %v73
    %v78 = vadd.f32 %v76, %v74
    %79 = vst [vmem:[#allocation5] sm:$0xff] %v77
    %80 = vst [vmem:[#allocation5 + $0x8] sm:$0xff] %v78
    // Predicated region
    $region10: #{tpu_custom_call.1} parent=1 // pred_check
      _
    $region11: #{tpu_custom_call.1} parent=1 // pred_check_branch
      %82 = sbr.rel (0) target = $region13
    $region12: #{tpu_custom_call.1} parent=1 // pred_region
      %s84 = ssub.s32 256, 256
      %85 = vsyncadd [#allocation4], %s84
      %s87 = sshll.u32 [#allocation5], 4
      %s88 = int_to_ptr.vmem [resolvable:$true] %s87
      %90 = dma.vmem_to_hbm [thread:$0]  %s88, 256, %s1, [#allocation4]
    $region13: #{tpu_custom_call.1} parent=1 // pred_fallthru
      _
    // Predicated region
    $region14: #{tpu_custom_call.1} parent=1 // pred_check
      _
    $region15: #{tpu_custom_call.1} parent=1 // pred_check_branch
      %92 = sbr.rel (0) target = $region17
    $region16: #{tpu_custom_call.1} parent=1 // pred_region
      %93 = dma.done [#allocation4], 256
    $region17: #{tpu_custom_call.1} parent=1 // pred_fallthru
      _
    %94 = vsyncpa [#allocation3], 1
    %95 = vsyncpa [#allocation4], 1

</llo_original>
